<compile_context>
chip_gen: v7x
topology: tpu7x:2x2x1
jax: 0.10.0
libtpu: 0.0.40
codegen_flags: <defaults>
</compile_context>

<pallas_src>
import functools

import jax
import jax.numpy as jnp
from jax import lax
from jax.experimental import pallas as pl
from jax.experimental.pallas import tpu as pltpu

_LANE = 128


def _channel_attention_kernel(x_ref, w1_ref, w2_ref, o_ref, sum_acc, max_acc,
                              *, hw_tile, hw_true, b_tile, needs_mask,
                              carry_in_vregs):
    # x_ref  : (b_tile, C, hw_tile)   w1_ref : (C, Cr)   w2_ref : (Cr, C)
    # o_ref  : (b_tile, 1, C)
    # sum_acc / max_acc : (b_tile, C, 128) f32 scratch, live across hw steps.
    hw_step = pl.program_id(1)
    n_hw = pl.num_programs(1)
    C = sum_acc.shape[1]
    n_chunks = hw_tile // _LANE

    @pl.when(hw_step == 0)
    def _init():
        sum_acc[...] = jnp.zeros_like(sum_acc)
        max_acc[...] = jnp.full_like(max_acc, -jnp.inf)

    def _load_chunk(j):
        # Per-chunk load straight from the ref (no full-tile materialization).
        if isinstance(j, int):
            return x_ref[:, :, j * _LANE:(j + 1) * _LANE].astype(jnp.float32)
        start = pl.multiple_of(j * _LANE, _LANE)
        return x_ref[:, :, pl.ds(start, _LANE)].astype(jnp.float32)

    def _fold(masked):
        # Fold every 128-lane chunk of this hw block into the accumulators.
        # masked=True additionally invalidates lanes past the true HW extent
        # (only ever needed on the ragged last hw step; the OOB part of the
        # partial block delivered by Pallas is undefined, so both sum and max
        # must be masked).  At least one valid lane always exists (HW >= 1).
        if masked:
            base = hw_step * hw_tile
            lane_pos = lax.broadcasted_iota(jnp.int32, (b_tile, C, _LANE), 2)

        def _apply(j, s, m):
            chunk = _load_chunk(j)
            if masked:
                limit = hw_true - base - j * _LANE        # scalar threshold
                valid = lane_pos < limit
                s = s + jnp.where(valid, chunk, 0.0)
                m = jnp.maximum(m, jnp.where(valid, chunk, -jnp.inf))
            else:
                s = s + chunk
                m = jnp.maximum(m, chunk)
            return s, m

        if carry_in_vregs:
            # Accumulators fit comfortably in the 256 KiB vreg file: carry
            # them as loop values (no per-chunk VMEM round trip).
            if n_chunks <= 8:
                s, m = sum_acc[...], max_acc[...]
                for j in range(n_chunks):
                    s, m = _apply(j, s, m)
            else:
                s, m = lax.fori_loop(
                    0, n_chunks, lambda j, c: _apply(j, *c),
                    (sum_acc[...], max_acc[...]), unroll=8)
            sum_acc[...] = s
            max_acc[...] = m
        else:
            # Large b_tile*C: update VMEM scratch in place per chunk so the
            # live vreg set stays at ~one chunk (avoids spills).
            def _body(j, carry):
                s, m = _apply(j, sum_acc[...], max_acc[...])
                sum_acc[...] = s
                max_acc[...] = m
                return carry

            if n_chunks <= 8:
                for j in range(n_chunks):
                    _body(j, 0)
            else:
                lax.fori_loop(0, n_chunks, _body, 0, unroll=2)

    if needs_mask:
        @pl.when(hw_step < n_hw - 1)
        def _full_steps():
            _fold(masked=False)

        @pl.when(hw_step == n_hw - 1)
        def _ragged_last_step():
            _fold(masked=True)
    else:
        _fold(masked=False)

    @pl.when(hw_step == n_hw - 1)
    def _finalize():
        inv_hw = jnp.float32(1.0 / hw_true)
        avg = jnp.sum(sum_acc[...], axis=-1) * inv_hw            # (b_tile, C)
        mx = jnp.max(max_acc[...], axis=-1)                      # (b_tile, C)

        w1 = w1_ref[...].astype(jnp.float32)                     # (C, Cr)
        w2 = w2_ref[...].astype(jnp.float32)                     # (Cr, C)

        # Fused shared MLP over (avg ; max): one matmul pair instead of two.
        pooled = jnp.concatenate([avg, mx], axis=0)              # (2*b_tile, C)
        h = jnp.maximum(
            jnp.dot(pooled, w1, preferred_element_type=jnp.float32), 0.0)
        y = jnp.dot(h, w2, preferred_element_type=jnp.float32)   # (2*b_tile, C)
        logits = y[:b_tile, :] + y[b_tile:, :]                   # (b_tile, C)
        o_ref[...] = jax.nn.sigmoid(logits).reshape(o_ref.shape).astype(
            o_ref.dtype)


def _pick_b_tile(B, C, HW, itemsize, target_block_bytes):
    """Largest batch tile (<=8) dividing B, keeping >=2 parallel grid blocks
    when B >= 2 (both v7x TensorCores busy) and within the block budget."""
    per_image = C * max(HW, 1) * itemsize
    best = 1
    for cand in range(1, min(B, 8) + 1):
        if B % cand:
            continue
        if B >= 2 and B // cand < 2:
            continue
        if cand * per_image <= max(target_block_bytes, per_image):
            best = cand
    return best


def _vmem_cap_bytes():
    # v7x: 64 MiB VMEM per TensorCore (keep ~48 MiB so 2-deep pipelining fits);
    # v5e/v6e: 128 MiB physical, allow ~100 MiB.  Unknown -> conservative cap.
    try:
        kind = jax.devices()[0].device_kind.lower()
    except Exception:
        kind = ""
    if "7" in kind:
        return 48 * 1024 * 1024
    if "v5" in kind or "v6" in kind:
        return 100 * 1024 * 1024
    return 48 * 1024 * 1024


def channel_attention(x, w1_conv, w2_conv, *, b_tile=None, max_hw_tile=32768,
                      target_block_bytes=8 * 1024 * 1024):
    """x: (B, C, H, W) NCHW.  w1_conv: (Cr, C, 1, 1), w2_conv: (C, Cr, 1, 1)."""
    B, C, H, W = x.shape
    Cr = w1_conv.shape[0]
    HW = H * W
    itemsize = jnp.dtype(x.dtype).itemsize

    if b_tile is None:
        b_tile = _pick_b_tile(B, C, HW, itemsize, target_block_bytes)
    assert B % b_tile == 0

    x_flat = x.reshape(B, C, HW)
    w1 = w1_conv.reshape(Cr, C).T               # (C, Cr)
    w2 = w2_conv.reshape(C, Cr).T               # (Cr, C)

    # Spatial tile: multiple of 128 lanes, multi-MiB to amortize the ~0.35us
    # per-grid-step overhead, but never larger than the lane-padded extent.
    hw_by_budget = max(
        _LANE,
        (target_block_bytes // (b_tile * C * itemsize)) // _LANE * _LANE)
    hw_tile = int(min(max_hw_tile, hw_by_budget, pl.cdiv(HW, _LANE) * _LANE))
    n_hw = pl.cdiv(HW, hw_tile)
    # No wrapper-side jnp.pad: the ragged last hw block is masked in-kernel.
    needs_mask = (HW % hw_tile) != 0

    grid = (B // b_tile, n_hw)
    # NOTE: for B == 1 only one v7x TensorCore is used; splitting the HW
    # reduction across a second parallel axis would need a combine epilogue.

    # Carry accumulators as fori_loop values when they fit in the vreg file,
    # otherwise fall back to in-place VMEM scratch updates.
    carry_in_vregs = (2 * b_tile * C * _LANE * 4) <= 128 * 1024

    kernel = functools.partial(
        _channel_attention_kernel,
        hw_tile=hw_tile, hw_true=HW, b_tile=b_tile, needs_mask=needs_mask,
        carry_in_vregs=carry_in_vregs)

    block_bytes = b_tile * C * hw_tile * itemsize
    scratch_bytes = 2 * b_tile * C * _LANE * 4
    weight_bytes = 2 * 2 * C * Cr * 4
    # Only x is streamed (double-buffered); scratch/weights are resident.
    need = 2 * block_bytes + scratch_bytes + weight_bytes + (4 << 20)
    vmem_limit = int(min(_vmem_cap_bytes(), max(16 << 20, need)))

    cost = pl.CostEstimate(
        flops=2 * B * C * HW + 8 * B * C * Cr,
        transcendentals=B * C,
        bytes_accessed=int(x_flat.size) * itemsize + 2 * C * Cr * 4
        + B * C * itemsize)

    out = pl.pallas_call(
        kernel,
        out_shape=jax.ShapeDtypeStruct((B, 1, C), x.dtype),
        grid_spec=pltpu.PrefetchScalarGridSpec(
            num_scalar_prefetch=0,
            grid=grid,
            in_specs=[
                pl.BlockSpec((b_tile, C, hw_tile), lambda b, h: (b, 0, h)),
                # Constant index maps: weights stay resident across hw steps.
                # (pl.Buffered(3) on x is a cheap extra on v5e/v6e if needed.)
                pl.BlockSpec((C, Cr), lambda b, h: (0, 0)),
                pl.BlockSpec((Cr, C), lambda b, h: (0, 0)),
            ],
            out_specs=pl.BlockSpec((b_tile, 1, C), lambda b, h: (b, 0, 0)),
            scratch_shapes=[
                pltpu.VMEM((b_tile, C, _LANE), jnp.float32),   # sum accumulator
                pltpu.VMEM((b_tile, C, _LANE), jnp.float32),   # max accumulator
            ],
        ),
        compiler_params=pltpu.CompilerParams(
            dimension_semantics=("parallel", "arbitrary"),
            vmem_limit_bytes=vmem_limit),
        cost_estimate=cost,
    )(x_flat, w1, w2)

    return out.reshape(B, C, 1, 1)


def channel_attention_ref(x, w1_conv, w2_conv):
    """Pure-JAX reference matching the PyTorch forward (f32 math)."""
    B, C, H, W = x.shape
    Cr = w1_conv.shape[0]
    xf = x.astype(jnp.float32)
    avg = jnp.mean(xf, axis=(2, 3))                     # (B, C)
    mx = jnp.max(xf, axis=(2, 3))                       # (B, C)
    w1 = w1_conv.reshape(Cr, C).astype(jnp.float32)
    w2 = w2_conv.reshape(C, Cr).astype(jnp.float32)

    def mlp(v):
        return jnp.maximum(v @ w1.T, 0.0) @ w2.T

    return jax.nn.sigmoid(mlp(avg) + mlp(mx)).reshape(B, C, 1, 1)


if __name__ == "__main__":
    root = jax.random.PRNGKey(0)

    def run_case(seed, B, C, ratio, H, W, dtype=jnp.float32, atol=1e-5, **kw):
        kx, k1, k2 = jax.random.split(jax.random.fold_in(root, seed), 3)
        Cr = max(C // ratio, 1)
        x = (jax.random.normal(kx, (B, C, H, W), dtype=jnp.float32)
             - 0.5).astype(dtype)
        w1 = 0.1 * jax.random.normal(k1, (Cr, C, 1, 1), dtype=jnp.float32)
        w2 = 0.1 * jax.random.normal(k2, (C, Cr, 1, 1), dtype=jnp.float32)
        out = channel_attention(x, w1, w2, **kw)
        jax.block_until_ready(out)
        ref = channel_attention_ref(x, w1, w2)
        assert out.shape == (B, C, 1, 1)
        assert jnp.allclose(out.astype(jnp.float32), ref, atol=atol,
                            rtol=1e-4), (
            f"mismatch: B={B} C={C} H={H} W={W} dtype={dtype}")

    # 1) Basic: single hw step, no masking (HW multiple of 128).
    run_case(1, B=2, C=32, ratio=16, H=16, W=16)
    # 2) Ragged spatial extent: single masked step, block > array extent.
    run_case(2, B=2, C=32, ratio=16, H=9, W=9)
    # 3) Multi-step reduction with ragged last step (forced small hw tile).
    run_case(3, B=2, C=32, ratio=16, H=20, W=20, max_hw_tile=128)
    # 4) Longer reduction: fori_loop chunk path with vreg-carried accumulators.
    run_case(4, B=2, C=32, ratio=16, H=32, W=64)
    # 5) Wide channel dim: in-place VMEM accumulator path (fori_loop).
    run_case(5, B=2, C=256, ratio=16, H=48, W=48)
    # 6) Batch tiling (b_tile > 1) with ragged spatial block.
    run_case(6, B=8, C=32, ratio=16, H=8, W=8)
    # 7) bf16 input (f32 accumulation in-kernel, bf16 output).
    run_case(7, B=2, C=32, ratio=16, H=16, W=16, dtype=jnp.bfloat16, atol=1e-2)

    print("KERNEL_OK")
</pallas_src>

<mosaic_0001>
module attributes {stable_mosaic.version = 11 : i64} {
  func.func @_channel_attention_kernel(%arg0: i32, %arg1: i32, %arg2: memref<1x32x256xf32, #tpu.memory_space<vmem>>, %arg3: memref<32x2xf32, #tpu.memory_space<vmem>>, %arg4: memref<2x32xf32, #tpu.memory_space<vmem>>, %arg5: memref<1x1x32xf32, #tpu.memory_space<vmem>>, %arg6: memref<1x32x128xf32, #tpu.memory_space<vmem>>, %arg7: memref<1x32x128xf32, #tpu.memory_space<vmem>>) attributes {dimension_semantics = [#tpu.dimension_semantics<parallel>, #tpu.dimension_semantics<arbitrary>], iteration_bounds = array<i64: 2, 1>, scalar_prefetch = 0 : i64, scratch_operands = 2 : i64, tpu.core_type = #tpu.core_type<tc>, window_params = [{transform_indices = @transform_0, window_bounds = array<i64: 1, 32, 256>}, {pipeline_mode = #tpu.pipeline_mode<synchronous>, transform_indices = @transform_1, window_bounds = array<i64: 32, 2>}, {pipeline_mode = #tpu.pipeline_mode<synchronous>, transform_indices = @transform_2, window_bounds = array<i64: 2, 32>}, {transform_indices = @transform_3, window_bounds = array<i64: 1, 1, 32>}]} {
    %c0_i32 = arith.constant 0 : i32
    %0 = arith.cmpi eq, %arg1, %c0_i32 : i32
    %1 = arith.extui %0 : i1 to i32
    %c0_i32_0 = arith.constant 0 : i32
    %2 = arith.cmpi ne, %1, %c0_i32_0 : i32
    scf.if %2 {
      %cst = arith.constant 0.000000e+00 : f32
      %16 = vector.broadcast %cst : f32 to vector<1x32x128xf32>
      %c0_19 = arith.constant 0 : index
      %c0_20 = arith.constant 0 : index
      %c0_21 = arith.constant 0 : index
      %17 = vector.load %arg6[%c0_19, %c0_20, %c0_21] : memref<1x32x128xf32, #tpu.memory_space<vmem>>, vector<1x32x128xf32>
      tpu.vector_store %arg6[%c0_19, %c0_20, %c0_21], %16 {strides = array<i32>} : memref<1x32x128xf32, #tpu.memory_space<vmem>>, vector<1x32x128xf32>,
      %cst_22 = arith.constant 0xFF800000 : f32
      %18 = vector.broadcast %cst_22 : f32 to vector<1x32x128xf32>
      %c0_23 = arith.constant 0 : index
      %c0_24 = arith.constant 0 : index
      %c0_25 = arith.constant 0 : index
      %19 = vector.load %arg7[%c0_23, %c0_24, %c0_25] : memref<1x32x128xf32, #tpu.memory_space<vmem>>, vector<1x32x128xf32>
      tpu.vector_store %arg7[%c0_23, %c0_24, %c0_25], %18 {strides = array<i32>} : memref<1x32x128xf32, #tpu.memory_space<vmem>>, vector<1x32x128xf32>,
    } else {
    }
    %c0 = arith.constant 0 : index
    %c0_1 = arith.constant 0 : index
    %c0_2 = arith.constant 0 : index
    %3 = vector.load %arg6[%c0, %c0_1, %c0_2] : memref<1x32x128xf32, #tpu.memory_space<vmem>>, vector<1x32x128xf32>
    %c0_3 = arith.constant 0 : index
    %c0_4 = arith.constant 0 : index
    %c0_5 = arith.constant 0 : index
    %4 = vector.load %arg7[%c0_3, %c0_4, %c0_5] : memref<1x32x128xf32, #tpu.memory_space<vmem>>, vector<1x32x128xf32>
    %c0_6 = arith.constant 0 : index
    %c0_7 = arith.constant 0 : index
    %c0_8 = arith.constant 0 : index
    %5 = vector.load %arg2[%c0_6, %c0_7, %c0_8] : memref<1x32x256xf32, #tpu.memory_space<vmem>>, vector<1x32x128xf32>
    %6 = arith.addf %3, %5 : vector<1x32x128xf32>
    %7 = arith.maximumf %4, %5 : vector<1x32x128xf32>
    %c0_9 = arith.constant 0 : index
    %c0_10 = arith.constant 0 : index
    %c128 = arith.constant 128 : index
    %8 = vector.load %arg2[%c0_9, %c0_10, %c128] : memref<1x32x256xf32, #tpu.memory_space<vmem>>, vector<1x32x128xf32>
    %9 = arith.addf %6, %8 : vector<1x32x128xf32>
    %10 = arith.maximumf %7, %8 : vector<1x32x128xf32>
    %c0_11 = arith.constant 0 : index
    %c0_12 = arith.constant 0 : index
    %c0_13 = arith.constant 0 : index
    %11 = vector.load %arg6[%c0_11, %c0_12, %c0_13] : memref<1x32x128xf32, #tpu.memory_space<vmem>>, vector<1x32x128xf32>
    tpu.vector_store %arg6[%c0_11, %c0_12, %c0_13], %9 {strides = array<i32>} : memref<1x32x128xf32, #tpu.memory_space<vmem>>, vector<1x32x128xf32>,
    %c0_14 = arith.constant 0 : index
    %c0_15 = arith.constant 0 : index
    %c0_16 = arith.constant 0 : index
    %12 = vector.load %arg7[%c0_14, %c0_15, %c0_16] : memref<1x32x128xf32, #tpu.memory_space<vmem>>, vector<1x32x128xf32>
    tpu.vector_store %arg7[%c0_14, %c0_15, %c0_16], %10 {strides = array<i32>} : memref<1x32x128xf32, #tpu.memory_space<vmem>>, vector<1x32x128xf32>,
    %c0_i32_17 = arith.constant 0 : i32
    %13 = arith.cmpi eq, %arg1, %c0_i32_17 : i32
    %14 = arith.extui %13 : i1 to i32
    %c0_i32_18 = arith.constant 0 : i32
    %15 = arith.cmpi ne, %14, %c0_i32_18 : i32
    scf.if %15 {
      %c0_19 = arith.constant 0 : index
      %c0_20 = arith.constant 0 : index
      %c0_21 = arith.constant 0 : index
      %16 = vector.load %arg6[%c0_19, %c0_20, %c0_21] : memref<1x32x128xf32, #tpu.memory_space<vmem>>, vector<1x32x128xf32>
      %cst = arith.constant dense<0.000000e+00> : vector<1x32xf32>
      %17 = vector.multi_reduction <add>, %16, %cst [2] : vector<1x32x128xf32> to vector<1x32xf32>
      %cst_22 = arith.constant 3.906250e-03 : f32
      %18 = vector.broadcast %cst_22 : f32 to vector<1x32xf32>
      %19 = arith.mulf %17, %18 : vector<1x32xf32>
      %c0_23 = arith.constant 0 : index
      %c0_24 = arith.constant 0 : index
      %c0_25 = arith.constant 0 : index
      %20 = vector.load %arg7[%c0_23, %c0_24, %c0_25] : memref<1x32x128xf32, #tpu.memory_space<vmem>>, vector<1x32x128xf32>
      %cst_26 = arith.constant dense<0xFF800000> : vector<1x32xf32>
      %21 = vector.multi_reduction <maximumf>, %20, %cst_26 [2] : vector<1x32x128xf32> to vector<1x32xf32>
      %c0_27 = arith.constant 0 : index
      %c0_28 = arith.constant 0 : index
      %22 = vector.load %arg3[%c0_27, %c0_28] : memref<32x2xf32, #tpu.memory_space<vmem>>, vector<32x2xf32>
      %c0_29 = arith.constant 0 : index
      %c0_30 = arith.constant 0 : index
      %23 = vector.load %arg4[%c0_29, %c0_30] : memref<2x32xf32, #tpu.memory_space<vmem>>, vector<2x32xf32>
      %24 = tpu.concatenate %19, %21 in 0 : vector<1x32xf32>, vector<1x32xf32> -> vector<2x32xf32>
      %cst_31 = arith.constant dense<0.000000e+00> : vector<2x2xf32>
      %25 = tpu.matmul %24, %22, %cst_31 {dimension_numbers = #tpu.dot_dimension_numbers<[1], [0], [0], [1], [0, 0, 1, 1], [], []>} : vector<2x32xf32>, vector<32x2xf32>, vector<2x2xf32> -> vector<2x2xf32>
      %cst_32 = arith.constant 0.000000e+00 : f32
      %26 = vector.broadcast %cst_32 : f32 to vector<2x2xf32>
      %27 = arith.maximumf %25, %26 : vector<2x2xf32>
      %cst_33 = arith.constant dense<0.000000e+00> : vector<2x32xf32>
      %28 = tpu.matmul %27, %23, %cst_33 {dimension_numbers = #tpu.dot_dimension_numbers<[1], [0], [0], [1], [0, 0, 1, 1], [], []>} : vector<2x2xf32>, vector<2x32xf32>, vector<2x32xf32> -> vector<2x32xf32>
      %29 = vector.extract_strided_slice %28 {offsets = [0, 0], sizes = [1, 32], strides = [1, 1]} : vector<2x32xf32> to vector<1x32xf32>
      %30 = vector.extract_strided_slice %28 {offsets = [1, 0], sizes = [1, 32], strides = [1, 1]} : vector<2x32xf32> to vector<1x32xf32>
      %31 = arith.addf %29, %30 : vector<1x32xf32>
      %32 = arith.negf %31 : vector<1x32xf32>
      %33 = math.exp %32 : vector<1x32xf32>
      %cst_34 = arith.constant 1.000000e+00 : f32
      %34 = vector.broadcast %cst_34 : f32 to vector<1x32xf32>
      %35 = arith.addf %34, %33 : vector<1x32xf32>
      %36 = arith.divf %34, %35 : vector<1x32xf32>
      %37 = vector.shape_cast %36 : vector<1x32xf32> to vector<1x1x32xf32>
      %c0_35 = arith.constant 0 : index
      %c0_36 = arith.constant 0 : index
      %c0_37 = arith.constant 0 : index
      %38 = vector.load %arg5[%c0_35, %c0_36, %c0_37] : memref<1x1x32xf32, #tpu.memory_space<vmem>>, vector<1x1x32xf32>
      tpu.vector_store %arg5[%c0_35, %c0_36, %c0_37], %37 {strides = array<i32>} : memref<1x1x32xf32, #tpu.memory_space<vmem>>, vector<1x1x32xf32>,
    } else {
    }
    return
  }
  func.func @transform_0(%arg0: i32, %arg1: i32) -> (i32, i32, i32) {
    %c0_i32 = arith.constant 0 : i32
    %c0_i32_0 = arith.constant 0 : i32
    return %arg0, %c0_i32, %arg1 : i32, i32, i32
  }
  func.func @transform_1(%arg0: i32, %arg1: i32) -> (i32, i32) {
    %c0_i32 = arith.constant 0 : i32
    %c0_i32_0 = arith.constant 0 : i32
    %c0_i32_1 = arith.constant 0 : i32
    return %c0_i32, %c0_i32_0 : i32, i32
  }
  func.func @transform_2(%arg0: i32, %arg1: i32) -> (i32, i32) {
    %c0_i32 = arith.constant 0 : i32
    %c0_i32_0 = arith.constant 0 : i32
    %c0_i32_1 = arith.constant 0 : i32
    return %c0_i32, %c0_i32_0 : i32, i32
  }
  func.func @transform_3(%arg0: i32, %arg1: i32) -> (i32, i32, i32) {
    %c0_i32 = arith.constant 0 : i32
    %c0_i32_0 = arith.constant 0 : i32
    %c0_i32_1 = arith.constant 0 : i32
    return %arg0, %c0_i32, %c0_i32_0 : i32, i32, i32
  }
}

</mosaic_0001>

<llo_original>
// kernel: tpu_custom_call.1
$region0: #{tpu_custom_call.1}
  #allocation0 [shape = 'u32[]', space=smem, size = 0x4, offset = 0x4, fixed_abs, tag = 'smem constant byte address 0x4 - core index']
  #allocation1 [shape = 'u32[144,128]{1,0:T(1,128)}', space=vmem, size = 0x12000, scoped, tag = 'internal scratch']
  #allocation2 [shape = 'f32[1,32,128]{2,1,0:T(8,128)}', space=vmem, size = 0x4000, scoped, tag = 'scratch operand']
  #allocation3 [shape = 'f32[1,32,128]{2,1,0:T(8,128)}', space=vmem, size = 0x4000, scoped, tag = 'scratch operand']
  %s0 = inlined_call_operand.hbm [shape: f32[2,32,256], index: 0, kind: input, shape index: {}]
  %s1 = inlined_call_operand.vmem [shape: f32[32,2], index: 1, kind: input, shape index: {}]
  %s2 = inlined_call_operand.vmem [shape: f32[2,32], index: 2, kind: input, shape index: {}]
  %s3 = inlined_call_operand.hbm [shape: f32[2,1,32], index: 3, kind: output, shape index: {}]
  %s4 = sld [smem:[#allocation0]]
  $region57: #{tpu_custom_call.1} parent=0
    _
  %s6 = ssub.s32 1, %s4
  %s7 = scalar_select 0, %s6, %s4
  $region1: #{tpu_custom_call.1} parent=0
    #allocation4 [shape = 'u8[65536]{0}', space=vmem, size = 0x10000, scoped, tag = 'input window, operand 0']
    #allocation5 [shape = 's32[2]{0}', space=sflag, size = 0x8, scoped, tag = 'scoped memory for tpu_custom_call.1']
    #allocation6 [shape = 's32[2]{0}', space=sflag, size = 0x8, scoped, tag = 'scoped memory for tpu_custom_call.1']
    #allocation7 [shape = 'u8[1024]{0}', space=vmem, size = 0x400, scoped, tag = 'output window, operand 0']
    %8 = vsyncpa [#allocation5], 0
    %s9 = scalar_lea.sflag [#allocation5], 1
    %10 = vsyncpa %s9, 0
    %11 = vsyncpa [#allocation6], 0
    %s12 = scalar_lea.sflag [#allocation6], 1
    %13 = vsyncpa %s12, 0
    loop: start=0, step=1, limit=4
    $region2: #{tpu_custom_call.1} parent=1 // loop_pre_header
      _
    $region3: #{tpu_custom_call.1} parent=1 // loop_header
      %s15 = sphi 0, %s19
      %p16 = scmp.ge.s32.totalorder %s15, 4
      %s22 = sphi 0, %s34
      %s23 = sphi 0, %s30
      %s24 = sphi 0, %s22
      %s25 = sphi 0, %s23
      %s26 = sphi 0, %s24
      %s27 = sphi 0, %s25
      %s39 = sphi 0, %s41
      %s42 = sphi 0, %s39
      %s43 = sphi 0, %s42
      %s59 = sphi 0, %s43
      %s63 = sphi 0, %s63
      %s65 = sphi 0, %s63
      %s66 = sphi 0, %s65
      %s80 = sphi 0, %s66
      %s84 = sphi 0, %s84
      %s86 = sphi 0, %s84
      %s87 = sphi 0, %s86
      %s101 = sphi 0, %s87
      %s107 = sphi 0, %s109
      %s110 = sphi 0, %s107
      %s111 = sphi 0, %s110
      %s127 = sphi 0, %s111
    $region4: #{tpu_custom_call.1} parent=1 // loop_header_branch
      %18 = sbr.rel (%p16) target = $region8
    $region5: #{tpu_custom_call.1} parent=1 // loop_body
      %s20 = ssub.s32 %s15, 1
      %s21 = ssub.s32 %s15, 2
      %s28 = sadd.s32 1, %s23
      %p29 = scmp.ge.s32.totalorder %s28, 1
      %s30 = scalar_select %p29, 0, %s28
      %s31 = sadd.s32 1, %s22
      %s32 = scalar_select %p29, %s31, %s22
      %p33 = scmp.ge.s32.totalorder %s32, 2
      %s34 = scalar_select %p33, 0, %s32
      %s35 = ssub.s32 %s22, %s34
      %s36 = ssub.s32 %s23, %s30
      %s37 = sor.u32 %s35, %s36
      %p38 = scmp.eq.s32.totalorder %s37, 0
      %s40 = sadd.s32 %s39, 1
      %s41 = scalar_select %p38, %s39, %s40
      %p44 = pneg %p38
      %p45 = scmp.eq.s32.totalorder %s15, 1
      %p46 = por %p44, %p45
      %p47 = scmp.ne.s32.totalorder %s39, %s42
      %p48 = scmp.eq.s32.totalorder %s15, 0
      %p49 = por %p47, %p48
      %p50 = scmp.ne.s32.totalorder %s39, %s42
      %p51 = scmp.eq.s32.totalorder %s20, 1
      %p52 = por %p50, %p51
      %p53 = scmp.ne.s32.totalorder %s42, %s43
      %p54 = scmp.eq.s32.totalorder %s20, 0
      %p55 = por %p53, %p54
      %p56 = scmp.ne.s32.totalorder %s42, %s43
      %p57 = scmp.eq.s32.totalorder %s21, 1
      %p58 = por %p56, %p57
      %p60 = scmp.ne.s32.totalorder %s43, %s59
      %p61 = scmp.eq.s32.totalorder %s21, 0
      %p62 = por %p60, %p61
      %s64 = sadd.s32 %s63, 1
      %p67 = scmp.eq.s32.totalorder %s15, 1
      %p68 = scmp.ne.s32.totalorder %s63, %s65
      %p69 = scmp.eq.s32.totalorder %s15, 0
      %p70 = por %p68, %p69
      %p71 = scmp.ne.s32.totalorder %s63, %s65
      %p72 = scmp.eq.s32.totalorder %s20, 1
      %p73 = por %p71, %p72
      %p74 = scmp.ne.s32.totalorder %s65, %s66
      %p75 = scmp.eq.s32.totalorder %s20, 0
      %p76 = por %p74, %p75
      %p77 = scmp.ne.s32.totalorder %s65, %s66
      %p78 = scmp.eq.s32.totalorder %s21, 1
      %p79 = por %p77, %p78
      %p81 = scmp.ne.s32.totalorder %s66, %s80
      %p82 = scmp.eq.s32.totalorder %s21, 0
      %p83 = por %p81, %p82
      %s85 = sadd.s32 %s84, 1
      %p88 = scmp.eq.s32.totalorder %s15, 1
      %p89 = scmp.ne.s32.totalorder %s84, %s86
      %p90 = scmp.eq.s32.totalorder %s15, 0
      %p91 = por %p89, %p90
      %p92 = scmp.ne.s32.totalorder %s84, %s86
      %p93 = scmp.eq.s32.totalorder %s20, 1
      %p94 = por %p92, %p93
      %p95 = scmp.ne.s32.totalorder %s86, %s87
      %p96 = scmp.eq.s32.totalorder %s20, 0
      %p97 = por %p95, %p96
      %p98 = scmp.ne.s32.totalorder %s86, %s87
      %p99 = scmp.eq.s32.totalorder %s21, 1
      %p100 = por %p98, %p99
      %p102 = scmp.ne.s32.totalorder %s87, %s101
      %p103 = scmp.eq.s32.totalorder %s21, 0
      %p104 = por %p102, %p103
      %s105 = ssub.s32 %s22, %s34
      %p106 = scmp.eq.s32.totalorder %s105, 0
      %s108 = sadd.s32 %s107, 1
      %s109 = scalar_select %p106, %s107, %s108
      %p112 = pneg %p106
      %p113 = scmp.eq.s32.totalorder %s15, 1
      %p114 = por %p112, %p113
      %p115 = scmp.ne.s32.totalorder %s107, %s110
      %p116 = scmp.eq.s32.totalorder %s15, 0
      %p117 = por %p115, %p116
      %p118 = scmp.ne.s32.totalorder %s107, %s110
      %p119 = scmp.eq.s32.totalorder %s20, 1
      %p120 = por %p118, %p119
      %p121 = scmp.ne.s32.totalorder %s110, %s111
      %p122 = scmp.eq.s32.totalorder %s20, 0
      %p123 = por %p121, %p122
      %p124 = scmp.ne.s32.totalorder %s110, %s111
      %p125 = scmp.eq.s32.totalorder %s21, 1
      %p126 = por %p124, %p125
      %p128 = scmp.ne.s32.totalorder %s111, %s127
      %p129 = scmp.eq.s32.totalorder %s21, 0
      %p130 = por %p128, %p129
      %p131 = scmp.le.s32.totalorder 1, %s15
      %p132 = scmp.lt.s32.totalorder %s15, 3
      %p133 = pnand %p131, %p132
      %p134 = pneg %p133
      // Predicated region
      $region9: #{tpu_custom_call.1} parent=5 // pred_check
        _
      $region10: #{tpu_custom_call.1} parent=5 // pred_check_branch
        %136 = sbr.rel (%p133) target = $region12
      $region11: #{tpu_custom_call.1} parent=5 // pred_region
        %s137 = ssub.s32 %s15, 1
        // Predicated region
        $region13: #{tpu_custom_call.1} parent=11 // pred_check
          %p138 = pneg %p76
        $region14: #{tpu_custom_call.1} parent=11 // pred_check_branch
          %140 = sbr.rel (%p138) target = $region16
        $region15: #{tpu_custom_call.1} parent=11 // pred_region
          _
        $region16: #{tpu_custom_call.1} parent=11 // pred_fallthru
          _
        // Predicated region
        $region17: #{tpu_custom_call.1} parent=11 // pred_check
          %p141 = pneg %p97
        $region18: #{tpu_custom_call.1} parent=11 // pred_check_branch
          %143 = sbr.rel (%p141) target = $region20
        $region19: #{tpu_custom_call.1} parent=11 // pred_region
          _
        $region20: #{tpu_custom_call.1} parent=11 // pred_fallthru
          _
      $region12: #{tpu_custom_call.1} parent=5 // pred_fallthru
        _
      %p144 = scmp.lt.s32.totalorder %s15, 2
      // Predicated region
      $region21: #{tpu_custom_call.1} parent=5 // pred_check
        %p145 = pneg %p144
      $region22: #{tpu_custom_call.1} parent=5 // pred_check_branch
        %147 = sbr.rel (%p145) target = $region24
      $region23: #{tpu_custom_call.1} parent=5 // pred_region
        // Predicated region
        $region25: #{tpu_custom_call.1} parent=23 // pred_check
          %p148 = pneg %p49
        $region26: #{tpu_custom_call.1} parent=23 // pred_check_branch
          %150 = sbr.rel (%p148) target = $region28
        $region27: #{tpu_custom_call.1} parent=23 // pred_region
          %s151 = sand.u32 %s39, 1
          %s152 = scalar_lea.sflag [#allocation5], %s151
          %s153 = sand.u32 %s39, 1
          %s154 = smul.addr %s153, 64
          %s155 = scalar_lea.vmem [#allocation4], %s154
          %s156 = smul.u32 2, %s23
          %s158 = ssub.s32 1024, 1024
          %159 = vsyncadd %s152, %s158
          %s160 = smul.addr %s22, 8
          %s161 = sadd.s32 %s156, %s160
          %s162 = smul.addr %s161, 128
          %s163 = scalar_lea.hbm %s0, %s162
          %s164 = sshll.u32 %s155, 4
          %s165 = int_to_ptr.vmem [resolvable:$true] %s164
          %170 = dma.hbm_to_vmem [thread:$0]  %s163, 1024, %s165, %s152, 256, 256, 16
        $region28: #{tpu_custom_call.1} parent=23 // pred_fallthru
          _
      $region24: #{tpu_custom_call.1} parent=5 // pred_fallthru
        _
      %p171 = scmp.le.s32.totalorder 1, %s15
      %p172 = scmp.lt.s32.totalorder %s15, 3
      %p173 = pnand %p171, %p172
      %p174 = pneg %p173
      // Predicated region
      $region29: #{tpu_custom_call.1} parent=5 // pred_check
        _
      $region30: #{tpu_custom_call.1} parent=5 // pred_check_branch
        %176 = sbr.rel (%p173) target = $region32
      $region31: #{tpu_custom_call.1} parent=5 // pred_region
        %s177 = ssub.s32 %s15, 1
        %s178 = sand.u32 %s42, 1
        %s179 = scalar_lea.sflag [#allocation5], %s178
        %s180 = sand.u32 %s42, 1
        %s181 = smul.addr %s180, 64
        %s182 = scalar_lea.vmem [#allocation4], %s181
        // Predicated region
        $region33: #{tpu_custom_call.1} parent=31 // pred_check
          %p183 = pneg %p55
        $region34: #{tpu_custom_call.1} parent=31 // pred_check_branch
          %185 = sbr.rel (%p183) target = $region36
        $region35: #{tpu_custom_call.1} parent=31 // pred_region
          %186 = dma.done %s179, 1024
        $region36: #{tpu_custom_call.1} parent=31 // pred_fallthru
          _
        %s187 = sand.u32 %s42, 1
        %s188 = scalar_lea.sflag [#allocation5], %s187
        %s189 = sand.u32 %s42, 1
        %s190 = smul.addr %s189, 64
        %s191 = scalar_lea.vmem [#allocation4], %s190
        %p192 = pneg %p55
        %p193 = pneg %p52
        %p194 = pneg %p76
        %p195 = pneg %p73
        %p196 = pneg %p97
        %p197 = pneg %p94
        %p198 = pneg %p123
        %p199 = pneg %p120
        %s200 = sand.u32 %s110, 1
        %s201 = scalar_lea.sflag [#allocation6], %s200
        %s202 = sand.u32 %s110, 1
        %s203 = scalar_lea.vmem [#allocation7], %s202
        %s204 = smul.u32 2, %s25
        %p205 = scmp.eq.s32.totalorder %s25, 0
        // Predicated region
        $region37: #{tpu_custom_call.1} parent=31 // pred_check
          %p206 = pneg %p205
        $region38: #{tpu_custom_call.1} parent=31 // pred_check_branch
          %208 = sbr.rel (%p206) target = $region40
        $region39: #{tpu_custom_call.1} parent=31 // pred_region
          %209 = vst [vmem:[#allocation2] sm:$0xff] 0.0
          %210 = vst [vmem:[#allocation2 + $0x8] sm:$0xff] 0.0
          %211 = vst [vmem:[#allocation2 + $0x10] sm:$0xff] 0.0
          %212 = vst [vmem:[#allocation2 + $0x18] sm:$0xff] 0.0
          %213 = vst [vmem:[#allocation3] sm:$0xff] -inf
          %214 = vst [vmem:[#allocation3 + $0x8] sm:$0xff] -inf
          %215 = vst [vmem:[#allocation3 + $0x10] sm:$0xff] -inf
          %216 = vst [vmem:[#allocation3 + $0x18] sm:$0xff] -inf
        $region40: #{tpu_custom_call.1} parent=31 // pred_fallthru
          _
        %v217 = vld [vmem:[#allocation2] sm:$0xff]
        %v218 = vld [vmem:[#allocation2 + $0x8] sm:$0xff]
        %v219 = vld [vmem:[#allocation2 + $0x10] sm:$0xff]
        %v220 = vld [vmem:[#allocation2 + $0x18] sm:$0xff]
        %v221 = vld [vmem:[#allocation3] sm:$0xff]
        %v222 = vld [vmem:[#allocation3 + $0x8] sm:$0xff]
        %v223 = vld [vmem:[#allocation3 + $0x10] sm:$0xff]
        %v224 = vld [vmem:[#allocation3 + $0x18] sm:$0xff]
        %v225 = vld [vmem:[%s182] sm:$0xff]
        %v226 = vld [vmem:[%s182 + $0x10] sm:$0xff]
        %v227 = vld [vmem:[%s182 + $0x20] sm:$0xff]
        %v228 = vld [vmem:[%s182 + $0x30] sm:$0xff]
        %v229 = vadd.f32 %v217, %v225
        %v230 = vadd.f32 %v218, %v226
        %v231 = vadd.f32 %v219, %v227
        %v232 = vadd.f32 %v220, %v228
        %v233 = vmax.f32 %v221, %v225
        %v234 = vmax.f32 %v222, %v226
        %v235 = vmax.f32 %v223, %v227
        %v236 = vmax.f32 %v224, %v228
        %v237 = vld [vmem:[%s182 + $0x8] sm:$0xff]
        %v238 = vld [vmem:[%s182 + $0x18] sm:$0xff]
        %v239 = vld [vmem:[%s182 + $0x28] sm:$0xff]
        %v240 = vld [vmem:[%s182 + $0x38] sm:$0xff]
        %v241 = vadd.f32 %v229, %v237
        %v242 = vadd.f32 %v230, %v238
        %v243 = vadd.f32 %v231, %v239
        %v244 = vadd.f32 %v232, %v240
        %v245 = vmax.f32 %v233, %v237
        %v246 = vmax.f32 %v234, %v238
        %v247 = vmax.f32 %v235, %v239
        %v248 = vmax.f32 %v236, %v240
        %249 = vst [vmem:[#allocation2] sm:$0xff] %v241
        %250 = vst [vmem:[#allocation2 + $0x8] sm:$0xff] %v242
        %251 = vst [vmem:[#allocation2 + $0x10] sm:$0xff] %v243
        %252 = vst [vmem:[#allocation2 + $0x18] sm:$0xff] %v244
        %253 = vst [vmem:[#allocation3] sm:$0xff] %v245
        %254 = vst [vmem:[#allocation3 + $0x8] sm:$0xff] %v246
        %255 = vst [vmem:[#allocation3 + $0x10] sm:$0xff] %v247
        %256 = vst [vmem:[#allocation3 + $0x18] sm:$0xff] %v248
        // Predicated region
        $region41: #{tpu_custom_call.1} parent=31 // pred_check
          %p257 = pneg %p205
        $region42: #{tpu_custom_call.1} parent=31 // pred_check_branch
          %259 = sbr.rel (%p257) target = $region44
        $region43: #{tpu_custom_call.1} parent=31 // pred_region
          %v260 = vld [vmem:[#allocation2] sm:$0xff]
          %v261 = vld [vmem:[#allocation2 + $0x8] sm:$0xff]
          %v262 = vld [vmem:[#allocation2 + $0x10] sm:$0xff]
          %v263 = vld [vmem:[#allocation2 + $0x18] sm:$0xff]
          %264 = vadd.xlane.f32.xlu0 %v260
          %v265 = vpop.xlane.xlu0 %264
          %266 = vadd.xlane.f32.xlu0 %v261
          %v267 = vpop.xlane.xlu0 %266
          %268 = vadd.xlane.f32.xlu0 %v262
          %v269 = vpop.xlane.xlu0 %268
          %270 = vadd.xlane.f32.xlu0 %v263
          %v271 = vpop.xlane.xlu0 %270
          %v272 = vmul.f32 %v265, 0.00390625
          %v273 = vmul.f32 %v267, 0.00390625
          %v274 = vmul.f32 %v269, 0.00390625
          %v275 = vmul.f32 %v271, 0.00390625
          %v276 = vld [vmem:[#allocation3] sm:$0xff]
          %v277 = vld [vmem:[#allocation3 + $0x8] sm:$0xff]
          %v278 = vld [vmem:[#allocation3 + $0x10] sm:$0xff]
          %v279 = vld [vmem:[#allocation3 + $0x18] sm:$0xff]
          %280 = vmax.xlane.f32.xlu0 %v276
          %v281 = vpop.xlane.xlu0 %280
          %282 = vmax.xlane.f32.xlu0 %v277
          %v283 = vpop.xlane.xlu0 %282
          %284 = vmax.xlane.f32.xlu0 %v278
          %v285 = vpop.xlane.xlu0 %284
          %286 = vmax.xlane.f32.xlu0 %v279
          %v287 = vpop.xlane.xlu0 %286
          %v288 = vld [vmem:[%s1] sm:$0xff]
          %v289 = vld [vmem:[%s1 + $0x8] sm:$0xff]
          %v290 = vld [vmem:[%s1 + $0x10] sm:$0xff]
          %v291 = vld [vmem:[%s1 + $0x18] sm:$0xff]
          %v292 = vld [vmem:[%s2] sm:$0x3]
          %v297 = vlaneseq
          %v298 = vand.u32 %v297, 127
          %v299 = vlaneseq
          %v300 = vshrl.u32 %v299, 7
          %v301 = vsub.s32 %v298, %v300
          %v302 = vrot.slane %v272, %v301
          %v303 = vadd.s32 %v298, 4294967288
          %v304 = vlaneseq
          %v305 = vshrl.u32 %v304, 7
          %v306 = vsub.s32 %v303, %v305
          %v307 = vrot.slane %v273, %v306
          %vm308 = vcmask 130112
          %v309 = vsel %vm308, %v307, %v302
          %v310 = vadd.s32 %v298, 4294967280
          %v311 = vlaneseq
          %v312 = vshrl.u32 %v311, 7
          %v313 = vsub.s32 %v310, %v312
          %v314 = vrot.slane %v274, %v313
          %vm315 = vcmask 195712
          %v316 = vsel %vm315, %v314, %v309
          %v317 = vadd.s32 %v298, 4294967272
          %v318 = vlaneseq
          %v319 = vshrl.u32 %v318, 7
          %v320 = vsub.s32 %v317, %v319
          %v321 = vrot.slane %v275, %v320
          %vm322 = vcmask 261312
          %v323 = vsel %vm322, %v321, %v316
          %v329 = vlaneseq
          %v330 = vshrl.u32 %v329, 7
          %v331 = vsub.s32 %v298, %v330
          %v332 = vrot.slane %v281, %v331
          %v333 = vlaneseq
          %v334 = vshrl.u32 %v333, 7
          %v335 = vsub.s32 %v303, %v334
          %v336 = vrot.slane %v283, %v335
          %v337 = vsel %vm308, %v336, %v332
          %v338 = vlaneseq
          %v339 = vshrl.u32 %v338, 7
          %v340 = vsub.s32 %v310, %v339
          %v341 = vrot.slane %v285, %v340
          %v342 = vsel %vm315, %v341, %v337
          %v343 = vlaneseq
          %v344 = vshrl.u32 %v343, 7
          %v345 = vsub.s32 %v317, %v344
          %v346 = vrot.slane %v287, %v345
          %v347 = vsel %vm322, %v346, %v342
          %vm349 = vcmask 1040384
          %v350 = vsel %vm349, %v323, %v347
          %vm351 = vcmask 261120
          %v353 = vsel %vm351, %v350, 0
          %355 = vmatprep.subr.mxu0 0.0
          %356 = vmatpush1.msra.mxu0 %v288
          %357 = vmatprep.subr.mxu0 0.0
          %358 = vmatpush1.msra.mxu0 %v289
          %359 = vmatprep.subr.mxu0 0.0
          %360 = vmatpush1.msra.mxu0 %v290
          %361 = vmatprep.subr.mxu0 0.0
          %362 = vmatpush1.msra.mxu0 %v291
          %363 = vmatprep.subr.mxu0 0.0
          %364 = vmatpush1.msra.mxu0 0.0
          %365 = vmatprep.subr.mxu0 0.0
          %366 = vmatpush1.msra.mxu0 0.0
          %367 = vmatprep.subr.mxu0 0.0
          %368 = vmatpush1.msra.mxu0 0.0
          %369 = vmatprep.subr.mxu0 0.0
          %370 = vmatpush1.msra.mxu0 0.0
          %371 = vmatprep.subr.mxu0 0.0
          %372 = vmatpush1.msra.mxu0 0.0
          %373 = vmatprep.subr.mxu0 0.0
          %374 = vmatpush1.msra.mxu0 0.0
          %375 = vmatprep.subr.mxu0 0.0
          %376 = vmatpush1.msra.mxu0 0.0
          %377 = vmatprep.subr.mxu0 0.0
          %378 = vmatpush1.msra.mxu0 0.0
          %379 = vmatprep.subr.mxu0 0.0
          %380 = vmatpush1.msra.mxu0 0.0
          %381 = vmatprep.subr.mxu0 0.0
          %382 = vmatpush1.msra.mxu0 0.0
          %383 = vmatprep.subr.mxu0 0.0
          %384 = vmatpush1.msra.mxu0 0.0
          %385 = vmatprep.subr.mxu0 0.0
          %386 = vmatpush1.msra.mxu0 0.0
          %387 = vmatprep.subr.mxu0 0.0
          %388 = vmatpush1.msra.mxu0 0.0
          %389 = vmatprep.subr.mxu0 0.0
          %390 = vmatpush1.msra.mxu0 0.0
          %391 = vmatprep.subr.mxu0 0.0
          %392 = vmatpush1.msra.mxu0 0.0
          %393 = vmatprep.subr.mxu0 0.0
          %394 = vmatpush1.msra.mxu0 0.0
          %395 = vmatprep.subr.mxu0 0.0
          %396 = vmatpush1.msra.mxu0 0.0
          %397 = vmatprep.subr.mxu0 0.0
          %398 = vmatpush1.msra.mxu0 0.0
          %399 = vmatprep.subr.mxu0 0.0
          %400 = vmatpush1.msra.mxu0 0.0
          %401 = vmatprep.subr.mxu0 0.0
          %402 = vmatpush1.msra.mxu0 0.0
          %403 = vmatprep.subr.mxu0 0.0
          %404 = vmatpush1.msra.mxu0 0.0
          %405 = vmatprep.subr.mxu0 0.0
          %406 = vmatpush1.msra.mxu0 0.0
          %407 = vmatprep.subr.mxu0 0.0
          %408 = vmatpush1.msra.mxu0 0.0
          %409 = vmatprep.subr.mxu0 0.0
          %410 = vmatpush1.msra.mxu0 0.0
          %411 = vmatprep.subr.mxu0 0.0
          %412 = vmatpush1.msra.mxu0 0.0
          %413 = vmatprep.subr.mxu0 0.0
          %414 = vmatpush1.msra.mxu0 0.0
          %415 = vmatprep.subr.mxu0 0.0
          %416 = vmatpush1.msra.mxu0 0.0
          %417 = vmatprep.subr.mxu0 0.0
          %418 = vmatpush1.msra.mxu0 0.0
          %419 = vmatprep.mubr.f32.mxu0 0.0
          %420 = vmatmul.mubr.f32.gmra.mrb[0].mxu0 %v353
          %v421 = vpop.f32.mrb[0].mxu0
          %v422 = vadd.f32 0.0, %v421
          %v423 = vpop.f32.mrb[0].mxu0
          %424 = vdwg.mxu0
          %v425 = vmax.f32 %v422, 0.0
          %vm426 = vcmask 15360
          %v428 = vsel %vm426, %v425, 0
          %vm430 = vcmask 1041408
          %v432 = vsel %vm430, %v292, 0
          %434 = vmatprep.subr.mxu0 0.0
          %435 = vmatpush1.msra.mxu0 %v432
          %436 = vmatprep.subr.mxu0 0.0
          %437 = vmatpush1.msra.mxu0 0.0
          %438 = vmatprep.subr.mxu0 0.0
          %439 = vmatpush1.msra.mxu0 0.0
          %440 = vmatprep.subr.mxu0 0.0
          %441 = vmatpush1.msra.mxu0 0.0
          %442 = vmatprep.subr.mxu0 0.0
          %443 = vmatpush1.msra.mxu0 0.0
          %444 = vmatprep.subr.mxu0 0.0
          %445 = vmatpush1.msra.mxu0 0.0
          %446 = vmatprep.subr.mxu0 0.0
          %447 = vmatpush1.msra.mxu0 0.0
          %448 = vmatprep.subr.mxu0 0.0
          %449 = vmatpush1.msra.mxu0 0.0
          %450 = vmatprep.subr.mxu0 0.0
          %451 = vmatpush1.msra.mxu0 0.0
          %452 = vmatprep.subr.mxu0 0.0
          %453 = vmatpush1.msra.mxu0 0.0
          %454 = vmatprep.subr.mxu0 0.0
          %455 = vmatpush1.msra.mxu0 0.0
          %456 = vmatprep.subr.mxu0 0.0
          %457 = vmatpush1.msra.mxu0 0.0
          %458 = vmatprep.subr.mxu0 0.0
          %459 = vmatpush1.msra.mxu0 0.0
          %460 = vmatprep.subr.mxu0 0.0
          %461 = vmatpush1.msra.mxu0 0.0
          %462 = vmatprep.subr.mxu0 0.0
          %463 = vmatpush1.msra.mxu0 0.0
          %464 = vmatprep.subr.mxu0 0.0
          %465 = vmatpush1.msra.mxu0 0.0
          %466 = vmatprep.subr.mxu0 0.0
          %467 = vmatpush1.msra.mxu0 0.0
          %468 = vmatprep.subr.mxu0 0.0
          %469 = vmatpush1.msra.mxu0 0.0
          %470 = vmatprep.subr.mxu0 0.0
          %471 = vmatpush1.msra.mxu0 0.0
          %472 = vmatprep.subr.mxu0 0.0
          %473 = vmatpush1.msra.mxu0 0.0
          %474 = vmatprep.subr.mxu0 0.0
          %475 = vmatpush1.msra.mxu0 0.0
          %476 = vmatprep.subr.mxu0 0.0
          %477 = vmatpush1.msra.mxu0 0.0
          %478 = vmatprep.subr.mxu0 0.0
          %479 = vmatpush1.msra.mxu0 0.0
          %480 = vmatprep.subr.mxu0 0.0
          %481 = vmatpush1.msra.mxu0 0.0
          %482 = vmatprep.subr.mxu0 0.0
          %483 = vmatpush1.msra.mxu0 0.0
          %484 = vmatprep.subr.mxu0 0.0
          %485 = vmatpush1.msra.mxu0 0.0
          %486 = vmatprep.subr.mxu0 0.0
          %487 = vmatpush1.msra.mxu0 0.0
          %488 = vmatprep.subr.mxu0 0.0
          %489 = vmatpush1.msra.mxu0 0.0
          %490 = vmatprep.subr.mxu0 0.0
          %491 = vmatpush1.msra.mxu0 0.0
          %492 = vmatprep.subr.mxu0 0.0
          %493 = vmatpush1.msra.mxu0 0.0
          %494 = vmatprep.subr.mxu0 0.0
          %495 = vmatpush1.msra.mxu0 0.0
          %496 = vmatprep.subr.mxu0 0.0
          %497 = vmatpush1.msra.mxu0 0.0
          %498 = vmatprep.mubr.f32.mxu0 0.0
          %499 = vmatmul.mubr.f32.gmra.mrb[0].mxu0 %v428
          %v500 = vpop.f32.mrb[0].mxu0
          %v501 = vadd.f32 0.0, %v500
          %v502 = vpop.f32.mrb[0].mxu0
          %503 = vdwg.mxu0
          %v505 = vrot.slane %v501, 1
          %v507 = vadd.f32 %v501, %v505
          %v508 = vxor.u32 %v507, 2147483648
          %v509 = vmul.f32 %v508, 1.442695
          %v510 = vpow.pop %v509
          %v511 = vadd.f32 %v510, 1.0
          %v512 = vrcp.pop %v511
          %v513 = vmul.f32 1.0, %v512
          %vm514 = vcmask 253952
          %515 = vst.msk [vmem:[%s203] sm:$0x1] %vm514, %v513
        $region44: #{tpu_custom_call.1} parent=31 // pred_fallthru
          _
        %s516 = sand.u32 %s110, 1
        %s517 = scalar_lea.sflag [#allocation6], %s516
        %s518 = sand.u32 %s110, 1
        %s519 = scalar_lea.vmem [#allocation7], %s518
        // Predicated region
        $region45: #{tpu_custom_call.1} parent=31 // pred_check
          %p520 = pneg %p120
        $region46: #{tpu_custom_call.1} parent=31 // pred_check_branch
          %522 = sbr.rel (%p520) target = $region48
        $region47: #{tpu_custom_call.1} parent=31 // pred_region
          %s524 = ssub.s32 16, 16
          %525 = vsyncadd %s517, %s524
          %s526 = smul.addr %s24, 16
          %s527 = scalar_lea.hbm %s3, %s526
          %s529 = sshll.u32 %s519, 4
          %s530 = int_to_ptr.vmem [resolvable:$true] %s529
          %532 = dma.vmem_to_hbm [thread:$0]  %s530, 16, %s527, %s517
        $region48: #{tpu_custom_call.1} parent=31 // pred_fallthru
          _
      $region32: #{tpu_custom_call.1} parent=5 // pred_fallthru
        _
      %p533 = scmp.le.s32.totalorder 2, %s15
      // Predicated region
      $region49: #{tpu_custom_call.1} parent=5 // pred_check
        %p534 = pneg %p533
      $region50: #{tpu_custom_call.1} parent=5 // pred_check_branch
        %536 = sbr.rel (%p534) target = $region52
      $region51: #{tpu_custom_call.1} parent=5 // pred_region
        %s537 = ssub.s32 %s15, 2
        // Predicated region
        $region53: #{tpu_custom_call.1} parent=51 // pred_check
          %p538 = pneg %p126
        $region54: #{tpu_custom_call.1} parent=51 // pred_check_branch
          %540 = sbr.rel (%p538) target = $region56
        $region55: #{tpu_custom_call.1} parent=51 // pred_region
          %s541 = sand.u32 %s111, 1
          %s542 = scalar_lea.sflag [#allocation6], %s541
          %s543 = sand.u32 %s111, 1
          %s544 = scalar_lea.vmem [#allocation7], %s543
          %545 = dma.done %s542, 16
        $region56: #{tpu_custom_call.1} parent=51 // pred_fallthru
          _
      $region52: #{tpu_custom_call.1} parent=5 // pred_fallthru
        _
    $region6: #{tpu_custom_call.1} parent=1 // loop_footer
      %s19 = sadd.s32 1, %s15
    $region7: #{tpu_custom_call.1} parent=1 // loop_footer_branch
      %14 = sbr.rel target = $region3
    $region8: #{tpu_custom_call.1} parent=1 // loop_exit
      _
    %546 = vsyncpa [#allocation5], 1
    %s547 = scalar_lea.sflag [#allocation5], 1
    %548 = vsyncpa %s547, 1
    %549 = vsyncpa [#allocation6], 1
    %s550 = scalar_lea.sflag [#allocation6], 1
    %551 = vsyncpa %s550, 1

</llo_original>
